<compile_context>
chip_gen: v5e
topology: v5e:2x2
jax: 0.10.0
libtpu: 0.0.40
codegen_flags: <defaults>
</compile_context>

<pallas_src>
import jax
import jax.numpy as jnp
from jax.experimental import pallas as pl
from jax.experimental.pallas import tpu as pltpu


def _scale_kernel(scale_ref, x_ref, o_ref):
    # scale_ref: SMEM (1, 1) float32 scalar; x_ref / o_ref: VMEM row-tiles.
    s = scale_ref[0, 0]                      # f32 broadcast, free under DMA bound
    o_ref[...] = (x_ref[...] * s).astype(o_ref.dtype)


def scale_layer(x: jax.Array, scale: jax.Array, *,
                tile_bytes: int = 4 << 20,
                donate_input: bool = False) -> jax.Array:
    """Pallas equivalent of ScaleLayer.forward: x * scale (scalar broadcast).

    x     : any-shape float array (module uses NCHW (N, C, H, W))
    scale : (1, 1, 1, 1) learnable scalar parameter (kept f32 in SMEM)
    """
    if scale.size != 1:
        # TODO(synk): non-scalar parameters_dimensions (general broadcast) is not
        # implemented as a Pallas kernel; fall back to the XLA broadcast multiply.
        return x * scale

    orig_shape = x.shape
    total = x.size
    itemsize = jnp.dtype(x.dtype).itemsize
    scale_smem = jnp.asarray(scale, dtype=jnp.float32).reshape(1, 1)

    # --- pick a lane-dense last dim (multiple of 128, prefer 1024) -----------
    flat = x.reshape(-1)
    lane = None
    for cand in (1024, 512, 256, 128):
        if total % cand == 0:
            lane = cand
            break
    if lane is None:
        # Pad-and-slice instead of running with a narrow (masked-store) lane.
        lane = 1024
        padded_total = pl.cdiv(total, lane) * lane
        flat = jnp.pad(flat, (0, padded_total - total))
    else:
        padded_total = total

    rows = padded_total // lane
    x2d = flat.reshape(rows, lane)

    # --- row-tile: ~tile_bytes of data, balanced across grid steps -----------
    tr = max(8, tile_bytes // (lane * itemsize))
    tr = min(tr, rows)
    if tr < rows:
        n_tiles = pl.cdiv(rows, tr)
        tr = pl.cdiv(rows, n_tiles)          # balance (avoid tiny last tile)
        tr = ((tr + 7) // 8) * 8             # sublane-aligned block rows
        tr = min(tr, rows)
    grid_len = pl.cdiv(rows, tr)

    extra = {}
    if donate_input:
        # Only pays off if the caller actually donates x at the jit boundary.
        extra["input_output_aliases"] = {1: 0}

    cost = pl.CostEstimate(
        flops=padded_total,
        transcendentals=0,
        bytes_accessed=2 * padded_total * itemsize,
    )

    def _run(dim_sem):
        return pl.pallas_call(
            _scale_kernel,
            out_shape=jax.ShapeDtypeStruct((rows, lane), x.dtype),
            grid=(grid_len,),
            in_specs=[
                pl.BlockSpec(memory_space=pltpu.SMEM),        # f32 scale scalar
                pl.BlockSpec((tr, lane), lambda i: (i, 0)),   # streamed input tile
            ],
            out_specs=pl.BlockSpec((tr, lane), lambda i: (i, 0)),
            compiler_params=pltpu.CompilerParams(
                dimension_semantics=(dim_sem,),
                vmem_limit_bytes=32 << 20,   # v5e default (16 MiB) is the binder
            ),
            cost_estimate=cost,
            **extra,
        )(scale_smem, x2d)

    # Prefer CORE_PARALLEL (both TCs on v7x); fall back to plain "parallel"
    # if this chip / JAX build rejects it for a standard pallas_call grid.
    dim_sems = []
    core_par = getattr(pltpu, "CORE_PARALLEL", None)
    if grid_len > 1 and core_par is not None:
        dim_sems.append(core_par)
    dim_sems.append("parallel")

    out2d = None
    last_err = None
    for ds in dim_sems:
        try:
            out2d = _run(ds)
            break
        except Exception as e:  # noqa: BLE001 — fall back to the safe semantics
            last_err = e
    if out2d is None:
        raise last_err

    if padded_total != total:
        return out2d.reshape(-1)[:total].reshape(orig_shape)
    return out2d.reshape(orig_shape)


if __name__ == "__main__":
    key = jax.random.PRNGKey(0)
    key2, key3 = jax.random.split(key)

    # Deterministic parameter init: Parameter(torch.ones((1,1,1,1)) * init_value)
    init_value = 1.5
    scale = jnp.ones((1, 1, 1, 1), dtype=jnp.float32) * init_value

    # Primary check: small NCHW input consistent with the module's usage.
    N, C, H, W = 2, 4, 16, 16
    x = jax.random.normal(key, (N, C, H, W), dtype=jnp.float32)
    out = jax.block_until_ready(scale_layer(x, scale))
    ref = x * scale
    assert out.shape == x.shape
    assert out.dtype == x.dtype
    assert jnp.allclose(out, ref, atol=1e-6, rtol=1e-6)

    # Pad-and-slice path (element count not a multiple of 128).
    x2 = jax.random.normal(key2, (2, 3, 5, 7), dtype=jnp.float32)
    out2 = jax.block_until_ready(scale_layer(x2, scale))
    assert jnp.allclose(out2, x2 * scale, atol=1e-6, rtol=1e-6)

    # Multi-tile grid (exercises the CORE_PARALLEL attempt + balanced tiling).
    x3 = jax.random.normal(key3, (2, 4, 64, 32), dtype=jnp.float32)
    out3 = jax.block_until_ready(scale_layer(x3, scale, tile_bytes=32 << 10))
    assert jnp.allclose(out3, x3 * scale, atol=1e-6, rtol=1e-6)

    print("KERNEL_OK")
</pallas_src>

<mosaic_0001>
module attributes {stable_mosaic.version = 11 : i64} {
  func.func @_scale_kernel(%arg0: i32, %arg1: memref<1x1xf32, #tpu.memory_space<smem>>, %arg2: memref<2x1024xf32, #tpu.memory_space<vmem>>, %arg3: memref<2x1024xf32, #tpu.memory_space<vmem>>) attributes {dimension_semantics = [#tpu.dimension_semantics<parallel>], iteration_bounds = array<i64: 1>, scalar_prefetch = 0 : i64, scratch_operands = 0 : i64, tpu.core_type = #tpu.core_type<tc>, window_params = [{transform_indices = @transform_0, window_bounds = array<i64: 1, 1>}, {transform_indices = @transform_1, window_bounds = array<i64: 2, 1024>}, {transform_indices = @transform_2, window_bounds = array<i64: 2, 1024>}]} {
    %c0 = arith.constant 0 : index
    %c0_0 = arith.constant 0 : index
    %0 = memref.load %arg1[%c0, %c0_0] : memref<1x1xf32, #tpu.memory_space<smem>>
    %c0_1 = arith.constant 0 : index
    %c0_2 = arith.constant 0 : index
    %1 = vector.load %arg2[%c0_1, %c0_2] : memref<2x1024xf32, #tpu.memory_space<vmem>>, vector<2x1024xf32>
    %2 = vector.broadcast %0 : f32 to vector<2x1024xf32>
    %3 = arith.mulf %1, %2 : vector<2x1024xf32>
    %c0_3 = arith.constant 0 : index
    %c0_4 = arith.constant 0 : index
    %4 = vector.load %arg3[%c0_3, %c0_4] : memref<2x1024xf32, #tpu.memory_space<vmem>>, vector<2x1024xf32>
    tpu.vector_store %arg3[%c0_3, %c0_4], %3 {strides = array<i32>} : memref<2x1024xf32, #tpu.memory_space<vmem>>, vector<2x1024xf32>,
    return
  }
  func.func @transform_0(%arg0: i32) -> (i32, i32) {
    %c0_i32 = arith.constant 0 : i32
    %c0_i32_0 = arith.constant 0 : i32
    %c0_i32_1 = arith.constant 0 : i32
    return %c0_i32, %c0_i32_0 : i32, i32
  }
  func.func @transform_1(%arg0: i32) -> (i32, i32) {
    %c0_i32 = arith.constant 0 : i32
    %c0_i32_0 = arith.constant 0 : i32
    return %arg0, %c0_i32 : i32, i32
  }
  func.func @transform_2(%arg0: i32) -> (i32, i32) {
    %c0_i32 = arith.constant 0 : i32
    %c0_i32_0 = arith.constant 0 : i32
    return %arg0, %c0_i32 : i32, i32
  }
}

</mosaic_0001>

<llo_original>
// kernel: tpu_custom_call.1
$region0: #{tpu_custom_call.1}
  #allocation0 [shape = 'u32[]', space=smem, size = 0x4, offset = 0x4, fixed_abs, tag = 'smem constant byte address 0x4 - core index']
  #allocation1 [shape = 'u32[72,128]{1,0:T(1,128)}', space=vmem, size = 0x9000, scoped, tag = 'internal scratch']
  #allocation2 [shape = 'f32[1,1]{1,0:T(1,128)S(6)}', space=smem, size = 0x200, scoped, tag = 'scoped memory for tpu_custom_call.1']
  %s0 = inlined_call_operand.<no memory space> [shape: f32[1,1], index: 0, kind: input, shape index: {}]
  %s1 = inlined_call_operand.hbm [shape: f32[2,1024], index: 1, kind: input, shape index: {}]
  %s2 = inlined_call_operand.hbm [shape: f32[2,1024], index: 2, kind: output, shape index: {}]
  %s3 = sld [smem:[#allocation0]]
  $region22: #{tpu_custom_call.1} parent=0
    _
  %s5 = ssub.s32 1, %s3
  %s6 = scalar_select 0, %s5, %s3
  %7 = sst [smem:[#allocation2]] %s0
  $region1: #{tpu_custom_call.1} parent=0
    #allocation3 [shape = 'u8[8192]{0}', space=vmem, size = 0x2000, scoped, tag = 'input window, operand 1, single buffered']
    #allocation4 [shape = 's32[1]{0}', space=sflag, size = 0x4, scoped, tag = 'scoped memory for tpu_custom_call.1']
    #allocation5 [shape = 's32[1]{0}', space=sflag, size = 0x4, scoped, tag = 'scoped memory for tpu_custom_call.1']
    #allocation6 [shape = 'u8[8192]{0}', space=vmem, size = 0x2000, scoped, tag = 'output window, operand 0, single buffered']
    %8 = vsyncpa [#allocation4], 0
    %9 = vsyncpa [#allocation5], 0
    // Predicated region
    $region2: #{tpu_custom_call.1} parent=1 // pred_check
      _
    $region3: #{tpu_custom_call.1} parent=1 // pred_check_branch
      %11 = sbr.rel (0) target = $region5
    $region4: #{tpu_custom_call.1} parent=1 // pred_region
      _
    $region5: #{tpu_custom_call.1} parent=1 // pred_fallthru
      _
    // Predicated region
    $region6: #{tpu_custom_call.1} parent=1 // pred_check
      _
    $region7: #{tpu_custom_call.1} parent=1 // pred_check_branch
      %13 = sbr.rel (0) target = $region9
    $region8: #{tpu_custom_call.1} parent=1 // pred_region
      %15 = vsyncadd [#allocation4], 0
      %s17 = sshll.u32 %s1, 4
      %s18 = int_to_ptr.hbm [resolvable:$true] %s17
      %s19 = sshll.u32 [#allocation3], 4
      %s20 = int_to_ptr.vmem [resolvable:$true] %s19
      %22 = dma.hbm_to_vmem [thread:$0]  %s18, 256, %s20, [#allocation4]
    $region9: #{tpu_custom_call.1} parent=1 // pred_fallthru
      _
    // Predicated region
    $region10: #{tpu_custom_call.1} parent=1 // pred_check
      _
    $region11: #{tpu_custom_call.1} parent=1 // pred_check_branch
      %24 = sbr.rel (0) target = $region13
    $region12: #{tpu_custom_call.1} parent=1 // pred_region
      %26 = dma.done [#allocation4], 256
    $region13: #{tpu_custom_call.1} parent=1 // pred_fallthru
      _
    %s27 = sld [smem:[#allocation2]]
    %v28 = vld [vmem:[#allocation3] sm:$0xff]
    %v29 = vld [vmem:[#allocation3 + $0x8] sm:$0xff]
    %v30 = vstv %s27
    %v31 = vmul.f32 %v28, %v30
    %v32 = vmul.f32 %v29, %v30
    %33 = vst [vmem:[#allocation6] sm:$0xff] %v31
    %34 = vst [vmem:[#allocation6 + $0x8] sm:$0xff] %v32
    // Predicated region
    $region14: #{tpu_custom_call.1} parent=1 // pred_check
      _
    $region15: #{tpu_custom_call.1} parent=1 // pred_check_branch
      %36 = sbr.rel (0) target = $region17
    $region16: #{tpu_custom_call.1} parent=1 // pred_region
      %38 = vsyncadd [#allocation5], 0
      %s40 = sshll.u32 [#allocation6], 4
      %s41 = int_to_ptr.vmem [resolvable:$true] %s40
      %s42 = sshll.u32 %s2, 4
      %s43 = int_to_ptr.hbm [resolvable:$true] %s42
      %45 = dma.vmem_to_hbm [thread:$0]  %s41, 256, %s43, [#allocation5]
    $region17: #{tpu_custom_call.1} parent=1 // pred_fallthru
      _
    // Predicated region
    $region18: #{tpu_custom_call.1} parent=1 // pred_check
      _
    $region19: #{tpu_custom_call.1} parent=1 // pred_check_branch
      %47 = sbr.rel (0) target = $region21
    $region20: #{tpu_custom_call.1} parent=1 // pred_region
      %49 = dma.done [#allocation5], 256
    $region21: #{tpu_custom_call.1} parent=1 // pred_fallthru
      _
    %50 = vsyncpa [#allocation4], 1
    %51 = vsyncpa [#allocation5], 1

</llo_original>
